<compile_context>
chip_gen: v5e
topology: v5e:2x2
jax: 0.10.0
libtpu: 0.0.40
codegen_flags: <defaults>
</compile_context>

<pallas_src>
import jax
import jax.numpy as jnp
from jax.experimental import pallas as pl
from jax.experimental.pallas import tpu as pltpu

# ----- hyperparameters implied by the module ---------------------------------
M = 8
SEQ = M + 1          # 9 tokens
DIM = 5              # transformer dim
DIM_HEAD = 5
MLP_DIM = 5
NEURONS = 32         # `neurons`
OUT = 2
LN_EPS = 1e-5
LANES = 128
NEG_BIG = -1e9       # additive mask for cross-batch attention entries


def _align8(n):
    return (n + 7) & ~7


def _layout(batch):
    """Row offsets of every tensor inside the single packed (rows, 128) buffer."""
    T = batch * SEQ
    off = {}
    r = 0
    off["vec"] = r;  r += 8                       # 8 single-row vectors
    off["wqkv"] = r; r = _align8(r + DIM)          # (DIM, 3*DIM_HEAD)
    off["wff1"] = r; r = _align8(r + DIM)          # (DIM, MLP_DIM)
    off["wff2"] = r; r = _align8(r + MLP_DIM)      # (MLP_DIM, DIM)
    off["wfc2"] = r; r = _align8(r + NEURONS)      # (NEURONS, OUT)
    off["mask"] = r; r = _align8(r + T)            # (T, T) additive attn mask
    off["rsel"] = r; r = _align8(r + batch)        # (batch, T) batch-sum selector
    off["wexp_blk"] = _align8(T)
    off["wexp"] = r; r = r + DIM * off["wexp_blk"] # DIM blocks of (T, NEURONS)
    off["total"] = _align8(r)
    off["T"] = T
    return off


# ----- in-kernel helpers ------------------------------------------------------
def _erf(x):
    # Abramowitz & Stegun 7.1.26, |err| < 1.5e-7 (matches exact-erf GELU to f32).
    a1, a2, a3, a4, a5 = 0.254829592, -0.284496736, 1.421413741, -1.453152027, 1.061405429
    p = 0.3275911
    sgn = jnp.where(x >= 0.0, 1.0, -1.0)
    ax = jnp.abs(x)
    t = 1.0 / (1.0 + p * ax)
    poly = ((((a5 * t + a4) * t + a3) * t + a2) * t + a1) * t
    return sgn * (1.0 - poly * jnp.exp(-ax * ax))


def _gelu_exact(x):
    return 0.5 * x * (1.0 + _erf(x * 0.7071067811865476))


def _layernorm(v, g, b):
    # single-pass: var = E[x^2] - mu^2 (halves the cross-lane reductions)
    mu = jnp.mean(v, axis=-1, keepdims=True)
    ex2 = jnp.mean(v * v, axis=-1, keepdims=True)
    var = ex2 - mu * mu
    return (v - mu) * jax.lax.rsqrt(var + LN_EPS) * g + b


# ----- the Pallas kernel: full forward pass on merged (B*S, .) operands --------
def make_kernel(batch):
    off = _layout(batch)
    T = off["T"]

    def kernel(x_ref, p_ref, out_ref):
        def pblock(row, nrows, ncols):
            # static row window (whole 128 lanes), then lane-prefix slice
            return p_ref[pl.ds(row, nrows), :][:, 0:ncols]

        def vec(i, n):
            return pblock(off["vec"] + i, 1, n)          # (1, n)

        xm = x_ref[...].astype(jnp.float32)              # (T, DIM)

        # ---- Attention block: x = Attn(LN(x)) + x ----
        xn = _layernorm(xm, vec(0, DIM), vec(1, DIM))
        wqkv = pblock(off["wqkv"], DIM, 3 * DIM_HEAD)    # Wq pre-scaled by d^-0.5
        qkv = jnp.dot(xn, wqkv, preferred_element_type=jnp.float32)   # (T, 15)
        q = qkv[:, 0:DIM_HEAD]
        k = qkv[:, DIM_HEAD:2 * DIM_HEAD]
        v = qkv[:, 2 * DIM_HEAD:3 * DIM_HEAD]

        s = jax.lax.dot_general(q, k, (((1,), (1,)), ((), ())),
                                preferred_element_type=jnp.float32)   # (T, T)
        s = s + pblock(off["mask"], T, T)                # block-diag: -1e9 cross-batch
        p = jnp.exp(s - jnp.max(s, axis=-1, keepdims=True))
        inv_l = pl.reciprocal(jnp.sum(p, axis=-1, keepdims=True), approx=True)
        attn = p * inv_l                                  # per-batch softmax
        o = jnp.dot(attn, v, preferred_element_type=jnp.float32)      # (T, DIM)
        # heads == 1, dim_head == dim  =>  to_out is Identity.
        xm = xm + o

        # ---- FeedForward block: x = FF(LN(x)) + x ----
        xn = _layernorm(xm, vec(2, DIM), vec(3, DIM))
        h = jnp.dot(xn, pblock(off["wff1"], DIM, MLP_DIM),
                    preferred_element_type=jnp.float32) + vec(4, MLP_DIM)
        h = _gelu_exact(h)
        h = jnp.dot(h, pblock(off["wff2"], MLP_DIM, DIM),
                    preferred_element_type=jnp.float32) + vec(5, DIM)
        xm = xm + h

        # ---- flatten + fc1 + ReLU + fc2 ----
        # out[b,n] = sum_{s,d} x[b,s,d] * Wfc1[s*D+d, n]
        #          = (Rsel @ H)[b,n],  H[t,n] = sum_d xm[t,d] * Wexp[t,d,n]
        # Wexp[t] = Wfc1 block for token position t % SEQ (tiled over batch).
        blk = off["wexp_blk"]
        H = xm[:, 0:1] * pblock(off["wexp"], T, NEURONS)
        for d in range(1, DIM):
            H = H + xm[:, d:d + 1] * pblock(off["wexp"] + d * blk, T, NEURONS)
        rsel = pblock(off["rsel"], batch, T)             # (B, T) 0/1 batch selector
        f = jnp.dot(rsel, H, preferred_element_type=jnp.float32) + vec(6, NEURONS)
        f = jnp.maximum(f, 0.0)                          # ReLU  (activate)
        y = jnp.dot(f, pblock(off["wfc2"], NEURONS, OUT),
                    preferred_element_type=jnp.float32) + vec(7, OUT)
        out_ref[...] = y.astype(out_ref.dtype)

    return kernel


# ----- parameter init + packing ------------------------------------------------
def init_params(key):
    ks = jax.random.split(key, 11)

    def nrm(k, shape, scale=0.1):
        return (scale * jax.random.normal(k, shape)).astype(jnp.float32)

    return dict(
        ln1_g=jnp.ones((1, DIM), jnp.float32),
        ln1_b=jnp.zeros((1, DIM), jnp.float32),
        wq=nrm(ks[0], (DIM, DIM_HEAD)),                  # (in, out) = W^T
        wk=nrm(ks[1], (DIM, DIM_HEAD)),
        wv=nrm(ks[2], (DIM, DIM_HEAD)),
        ln2_g=jnp.ones((1, DIM), jnp.float32),
        ln2_b=jnp.zeros((1, DIM), jnp.float32),
        wff1=nrm(ks[3], (DIM, MLP_DIM)),
        bff1=nrm(ks[4], (1, MLP_DIM)),
        wff2=nrm(ks[5], (MLP_DIM, DIM)),
        bff2=nrm(ks[6], (1, DIM)),
        wfc1=nrm(ks[7], (SEQ * DIM, NEURONS)).reshape(SEQ, DIM, NEURONS),  # fc1.weight.T
        bfc1=nrm(ks[8], (1, NEURONS)),
        wfc2=nrm(ks[9], (NEURONS, OUT)),                 # fc2.weight.T
        bfc2=nrm(ks[10], (1, OUT)),
    )


def pack_params(prm, batch):
    """Pack all weights/biases + structural constants into one (rows, 128) f32 buffer."""
    off = _layout(batch)
    T = off["T"]
    buf = jnp.zeros((off["total"], LANES), jnp.float32)

    def put(b_, row, a):
        a = jnp.asarray(a, jnp.float32)
        return b_.at[row:row + a.shape[0], 0:a.shape[1]].set(a)

    V = off["vec"]
    buf = put(buf, V + 0, prm["ln1_g"])
    buf = put(buf, V + 1, prm["ln1_b"])
    buf = put(buf, V + 2, prm["ln2_g"])
    buf = put(buf, V + 3, prm["ln2_b"])
    buf = put(buf, V + 4, prm["bff1"])
    buf = put(buf, V + 5, prm["bff2"])
    buf = put(buf, V + 6, prm["bfc1"])
    buf = put(buf, V + 7, prm["bfc2"])

    scale = DIM_HEAD ** -0.5
    wqkv = jnp.concatenate([prm["wq"] * scale, prm["wk"], prm["wv"]], axis=1)
    buf = put(buf, off["wqkv"], wqkv)
    buf = put(buf, off["wff1"], prm["wff1"])
    buf = put(buf, off["wff2"], prm["wff2"])
    buf = put(buf, off["wfc2"], prm["wfc2"])

    bidx = jnp.arange(T) // SEQ                                        # batch id per row
    mask = jnp.where(bidx[:, None] == bidx[None, :], 0.0, NEG_BIG)     # (T, T)
    buf = put(buf, off["mask"], mask)
    rsel = (bidx[None, :] == jnp.arange(batch)[:, None]).astype(jnp.float32)  # (B, T)
    buf = put(buf, off["rsel"], rsel)

    # Wexp[t, d, :] = wfc1[t % SEQ, d, :]; stored as DIM blocks of (T, NEURONS)
    wexp = jnp.tile(prm["wfc1"], (batch, 1, 1))                        # (T, DIM, NEURONS)
    for d in range(DIM):
        buf = put(buf, off["wexp"] + d * off["wexp_blk"], wexp[:, d, :])
    return buf


# ----- wrapper ----------------------------------------------------------------
@jax.jit
def rvtdsan_forward(x, packed):
    batch = x.shape[0]
    xm = x.reshape(batch * SEQ, DIM)          # free in XLA; merged sublane layout
    kernel = make_kernel(batch)
    return pl.pallas_call(
        kernel,
        out_shape=jax.ShapeDtypeStruct((batch, OUT), jnp.float32),
        in_specs=[pl.BlockSpec(memory_space=pltpu.MemorySpace.VMEM),
                  pl.BlockSpec(memory_space=pltpu.MemorySpace.VMEM)],
        out_specs=pl.BlockSpec(memory_space=pltpu.MemorySpace.VMEM),
    )(xm, packed)
    # TODO(synk): at large batch, add a grid over batch with
    # dimension_semantics=("parallel",) to use both v7x TensorCores.


# ----- pure-JAX reference (for correctness check) ------------------------------
def rvtdsan_reference(x, p):
    def ln(v, g, b):
        mu = jnp.mean(v, -1, keepdims=True)
        var = jnp.mean((v - mu) ** 2, -1, keepdims=True)
        return (v - mu) / jnp.sqrt(var + LN_EPS) * g + b

    xn = ln(x, p["ln1_g"], p["ln1_b"])
    q, k, v = xn @ p["wq"], xn @ p["wk"], xn @ p["wv"]
    s = jnp.einsum("bqe,bke->bqk", q, k) * (DIM_HEAD ** -0.5)
    attn = jax.nn.softmax(s, axis=-1)
    x = jnp.einsum("bqk,bke->bqe", attn, v) + x
    xn = ln(x, p["ln2_g"], p["ln2_b"])
    h = jax.nn.gelu(xn @ p["wff1"] + p["bff1"], approximate=False)
    x = (h @ p["wff2"] + p["bff2"]) + x
    flat = x.reshape(x.shape[0], SEQ * DIM)
    f = jax.nn.relu(flat @ p["wfc1"].reshape(SEQ * DIM, NEURONS) + p["bfc1"])
    return f @ p["wfc2"] + p["bfc2"]


if __name__ == "__main__":
    key = jax.random.PRNGKey(0)
    kx, kp = jax.random.split(key)
    B = 2
    x = jax.random.normal(kx, (B, SEQ, DIM), dtype=jnp.float32)   # (2, 9, 5)
    params = init_params(kp)
    packed = pack_params(params, B)

    out = rvtdsan_forward(x, packed)
    jax.block_until_ready(out)

    ref = rvtdsan_reference(x, params)
    assert out.shape == (B, OUT)
    # 2e-3 slack covers the approximate-reciprocal softmax + erf approximation.
    assert jnp.allclose(out, ref, rtol=2e-3, atol=2e-3), (out, ref)
    print("KERNEL_OK")
</pallas_src>

<mosaic_0001>
module attributes {stable_mosaic.version = 11 : i64} {
  func.func @kernel(%arg0: memref<18x5xf32, #tpu.memory_space<vmem>>, %arg1: memref<216x128xf32, #tpu.memory_space<vmem>>, %arg2: memref<2x2xf32, #tpu.memory_space<vmem>>) attributes {dimension_semantics = [], scalar_prefetch = 0 : i64, scratch_operands = 0 : i64, tpu.core_type = #tpu.core_type<tc>} {
    %c0 = arith.constant 0 : index
    %c0_0 = arith.constant 0 : index
    %0 = vector.load %arg0[%c0, %c0_0] : memref<18x5xf32, #tpu.memory_space<vmem>>, vector<18x5xf32>
    %c0_1 = arith.constant 0 : index
    %c0_2 = arith.constant 0 : index
    %1 = vector.load %arg1[%c0_1, %c0_2] : memref<216x128xf32, #tpu.memory_space<vmem>>, vector<1x128xf32>
    %2 = vector.extract_strided_slice %1 {offsets = [0, 0], sizes = [1, 5], strides = [1, 1]} : vector<1x128xf32> to vector<1x5xf32>
    %c1 = arith.constant 1 : index
    %c0_3 = arith.constant 0 : index
    %3 = vector.load %arg1[%c1, %c0_3] : memref<216x128xf32, #tpu.memory_space<vmem>>, vector<1x128xf32>
    %4 = vector.extract_strided_slice %3 {offsets = [0, 0], sizes = [1, 5], strides = [1, 1]} : vector<1x128xf32> to vector<1x5xf32>
    %cst = arith.constant dense<0.000000e+00> : vector<18xf32>
    %5 = vector.multi_reduction <add>, %0, %cst [1] : vector<18x5xf32> to vector<18xf32>
    %6 = vector.shape_cast %5 : vector<18xf32> to vector<18x1xf32>
    %cst_4 = arith.constant 5.000000e+00 : f32
    %7 = vector.broadcast %cst_4 : f32 to vector<18x1xf32>
    %8 = arith.divf %6, %7 : vector<18x1xf32>
    %9 = arith.mulf %0, %0 : vector<18x5xf32>
    %cst_5 = arith.constant dense<0.000000e+00> : vector<18xf32>
    %10 = vector.multi_reduction <add>, %9, %cst_5 [1] : vector<18x5xf32> to vector<18xf32>
    %11 = vector.shape_cast %10 : vector<18xf32> to vector<18x1xf32>
    %cst_6 = arith.constant 5.000000e+00 : f32
    %12 = vector.broadcast %cst_6 : f32 to vector<18x1xf32>
    %13 = arith.divf %11, %12 : vector<18x1xf32>
    %14 = arith.mulf %8, %8 : vector<18x1xf32>
    %15 = arith.subf %13, %14 : vector<18x1xf32>
    %16 = vector.broadcast %8 : vector<18x1xf32> to vector<18x5xf32>
    %17 = arith.subf %0, %16 : vector<18x5xf32>
    %cst_7 = arith.constant 9.99999974E-6 : f32
    %18 = vector.broadcast %cst_7 : f32 to vector<18x1xf32>
    %19 = arith.addf %15, %18 : vector<18x1xf32>
    %20 = math.rsqrt %19 : vector<18x1xf32>
    %21 = vector.broadcast %20 : vector<18x1xf32> to vector<18x5xf32>
    %22 = arith.mulf %17, %21 : vector<18x5xf32>
    %23 = vector.broadcast %2 : vector<1x5xf32> to vector<18x5xf32>
    %24 = arith.mulf %22, %23 : vector<18x5xf32>
    %25 = vector.broadcast %4 : vector<1x5xf32> to vector<18x5xf32>
    %26 = arith.addf %24, %25 : vector<18x5xf32>
    %c8 = arith.constant 8 : index
    %c0_8 = arith.constant 0 : index
    %27 = vector.load %arg1[%c8, %c0_8] : memref<216x128xf32, #tpu.memory_space<vmem>>, vector<5x128xf32>
    %28 = vector.extract_strided_slice %27 {offsets = [0, 0], sizes = [5, 15], strides = [1, 1]} : vector<5x128xf32> to vector<5x15xf32>
    %cst_9 = arith.constant dense<0.000000e+00> : vector<18x15xf32>
    %29 = tpu.matmul %26, %28, %cst_9 {dimension_numbers = #tpu.dot_dimension_numbers<[1], [0], [0], [1], [0, 0, 1, 1], [], []>} : vector<18x5xf32>, vector<5x15xf32>, vector<18x15xf32> -> vector<18x15xf32>
    %30 = vector.extract_strided_slice %29 {offsets = [0, 0], sizes = [18, 5], strides = [1, 1]} : vector<18x15xf32> to vector<18x5xf32>
    %31 = vector.extract_strided_slice %29 {offsets = [0, 5], sizes = [18, 5], strides = [1, 1]} : vector<18x15xf32> to vector<18x5xf32>
    %32 = vector.extract_strided_slice %29 {offsets = [0, 10], sizes = [18, 5], strides = [1, 1]} : vector<18x15xf32> to vector<18x5xf32>
    %cst_10 = arith.constant dense<0.000000e+00> : vector<18x18xf32>
    %33 = tpu.matmul %30, %31, %cst_10 {dimension_numbers = #tpu.dot_dimension_numbers<[1], [1], [0], [0], [0, 0, 1, 0], [], []>} : vector<18x5xf32>, vector<18x5xf32>, vector<18x18xf32> -> vector<18x18xf32>
    %c64 = arith.constant 64 : index
    %c0_11 = arith.constant 0 : index
    %34 = vector.load %arg1[%c64, %c0_11] : memref<216x128xf32, #tpu.memory_space<vmem>>, vector<18x128xf32>
    %35 = vector.extract_strided_slice %34 {offsets = [0, 0], sizes = [18, 18], strides = [1, 1]} : vector<18x128xf32> to vector<18x18xf32>
    %36 = arith.addf %33, %35 : vector<18x18xf32>
    %cst_12 = arith.constant dense<0xFF800000> : vector<18xf32>
    %37 = vector.multi_reduction <maximumf>, %36, %cst_12 [1] : vector<18x18xf32> to vector<18xf32>
    %38 = vector.shape_cast %37 : vector<18xf32> to vector<18x1xf32>
    %39 = vector.broadcast %38 : vector<18x1xf32> to vector<18x18xf32>
    %40 = arith.subf %36, %39 : vector<18x18xf32>
    %41 = math.exp %40 : vector<18x18xf32>
    %cst_13 = arith.constant dense<0.000000e+00> : vector<18xf32>
    %42 = vector.multi_reduction <add>, %41, %cst_13 [1] : vector<18x18xf32> to vector<18xf32>
    %43 = vector.shape_cast %42 : vector<18xf32> to vector<18x1xf32>
    %44 = tpu.reciprocal %43 {approx = true} : vector<18x1xf32> -> vector<18x1xf32>
    %45 = vector.broadcast %44 : vector<18x1xf32> to vector<18x18xf32>
    %46 = arith.mulf %41, %45 : vector<18x18xf32>
    %cst_14 = arith.constant dense<0.000000e+00> : vector<18x5xf32>
    %47 = tpu.matmul %46, %32, %cst_14 {dimension_numbers = #tpu.dot_dimension_numbers<[1], [0], [0], [1], [0, 0, 1, 1], [], []>} : vector<18x18xf32>, vector<18x5xf32>, vector<18x5xf32> -> vector<18x5xf32>
    %48 = arith.addf %0, %47 : vector<18x5xf32>
    %c2 = arith.constant 2 : index
    %c0_15 = arith.constant 0 : index
    %49 = vector.load %arg1[%c2, %c0_15] : memref<216x128xf32, #tpu.memory_space<vmem>>, vector<1x128xf32>
    %50 = vector.extract_strided_slice %49 {offsets = [0, 0], sizes = [1, 5], strides = [1, 1]} : vector<1x128xf32> to vector<1x5xf32>
    %c3 = arith.constant 3 : index
    %c0_16 = arith.constant 0 : index
    %51 = vector.load %arg1[%c3, %c0_16] : memref<216x128xf32, #tpu.memory_space<vmem>>, vector<1x128xf32>
    %52 = vector.extract_strided_slice %51 {offsets = [0, 0], sizes = [1, 5], strides = [1, 1]} : vector<1x128xf32> to vector<1x5xf32>
    %cst_17 = arith.constant dense<0.000000e+00> : vector<18xf32>
    %53 = vector.multi_reduction <add>, %48, %cst_17 [1] : vector<18x5xf32> to vector<18xf32>
    %54 = vector.shape_cast %53 : vector<18xf32> to vector<18x1xf32>
    %cst_18 = arith.constant 5.000000e+00 : f32
    %55 = vector.broadcast %cst_18 : f32 to vector<18x1xf32>
    %56 = arith.divf %54, %55 : vector<18x1xf32>
    %57 = arith.mulf %48, %48 : vector<18x5xf32>
    %cst_19 = arith.constant dense<0.000000e+00> : vector<18xf32>
    %58 = vector.multi_reduction <add>, %57, %cst_19 [1] : vector<18x5xf32> to vector<18xf32>
    %59 = vector.shape_cast %58 : vector<18xf32> to vector<18x1xf32>
    %cst_20 = arith.constant 5.000000e+00 : f32
    %60 = vector.broadcast %cst_20 : f32 to vector<18x1xf32>
    %61 = arith.divf %59, %60 : vector<18x1xf32>
    %62 = arith.mulf %56, %56 : vector<18x1xf32>
    %63 = arith.subf %61, %62 : vector<18x1xf32>
    %64 = vector.broadcast %56 : vector<18x1xf32> to vector<18x5xf32>
    %65 = arith.subf %48, %64 : vector<18x5xf32>
    %cst_21 = arith.constant 9.99999974E-6 : f32
    %66 = vector.broadcast %cst_21 : f32 to vector<18x1xf32>
    %67 = arith.addf %63, %66 : vector<18x1xf32>
    %68 = math.rsqrt %67 : vector<18x1xf32>
    %69 = vector.broadcast %68 : vector<18x1xf32> to vector<18x5xf32>
    %70 = arith.mulf %65, %69 : vector<18x5xf32>
    %71 = vector.broadcast %50 : vector<1x5xf32> to vector<18x5xf32>
    %72 = arith.mulf %70, %71 : vector<18x5xf32>
    %73 = vector.broadcast %52 : vector<1x5xf32> to vector<18x5xf32>
    %74 = arith.addf %72, %73 : vector<18x5xf32>
    %c16 = arith.constant 16 : index
    %c0_22 = arith.constant 0 : index
    %75 = vector.load %arg1[%c16, %c0_22] : memref<216x128xf32, #tpu.memory_space<vmem>>, vector<5x128xf32>
    %76 = vector.extract_strided_slice %75 {offsets = [0, 0], sizes = [5, 5], strides = [1, 1]} : vector<5x128xf32> to vector<5x5xf32>
    %cst_23 = arith.constant dense<0.000000e+00> : vector<18x5xf32>
    %77 = tpu.matmul %74, %76, %cst_23 {dimension_numbers = #tpu.dot_dimension_numbers<[1], [0], [0], [1], [0, 0, 1, 1], [], []>} : vector<18x5xf32>, vector<5x5xf32>, vector<18x5xf32> -> vector<18x5xf32>
    %c4 = arith.constant 4 : index
    %c0_24 = arith.constant 0 : index
    %78 = vector.load %arg1[%c4, %c0_24] : memref<216x128xf32, #tpu.memory_space<vmem>>, vector<1x128xf32>
    %79 = vector.extract_strided_slice %78 {offsets = [0, 0], sizes = [1, 5], strides = [1, 1]} : vector<1x128xf32> to vector<1x5xf32>
    %80 = vector.broadcast %79 : vector<1x5xf32> to vector<18x5xf32>
    %81 = arith.addf %77, %80 : vector<18x5xf32>
    %cst_25 = arith.constant 5.000000e-01 : f32
    %82 = vector.broadcast %cst_25 : f32 to vector<18x5xf32>
    %83 = arith.mulf %82, %81 : vector<18x5xf32>
    %cst_26 = arith.constant 0.707106769 : f32
    %84 = vector.broadcast %cst_26 : f32 to vector<18x5xf32>
    %85 = arith.mulf %81, %84 : vector<18x5xf32>
    %cst_27 = arith.constant 0.000000e+00 : f32
    %86 = vector.broadcast %cst_27 : f32 to vector<18x5xf32>
    %87 = arith.cmpf oge, %85, %86 : vector<18x5xf32>
    %cst_28 = arith.constant 1.000000e+00 : f32
    %cst_29 = arith.constant -1.000000e+00 : f32
    %88 = vector.broadcast %cst_28 : f32 to vector<18x5xf32>
    %89 = vector.broadcast %cst_29 : f32 to vector<18x5xf32>
    %90 = arith.select %87, %88, %89 : vector<18x5xi1>, vector<18x5xf32>
    %91 = math.absf %85 : vector<18x5xf32>
    %cst_30 = arith.constant 0.327591091 : f32
    %92 = vector.broadcast %cst_30 : f32 to vector<18x5xf32>
    %93 = arith.mulf %92, %91 : vector<18x5xf32>
    %cst_31 = arith.constant 1.000000e+00 : f32
    %94 = vector.broadcast %cst_31 : f32 to vector<18x5xf32>
    %95 = arith.addf %94, %93 : vector<18x5xf32>
    %cst_32 = arith.constant 1.000000e+00 : f32
    %96 = vector.broadcast %cst_32 : f32 to vector<18x5xf32>
    %97 = arith.divf %96, %95 : vector<18x5xf32>
    %cst_33 = arith.constant 1.06140542 : f32
    %98 = vector.broadcast %cst_33 : f32 to vector<18x5xf32>
    %99 = arith.mulf %98, %97 : vector<18x5xf32>
    %cst_34 = arith.constant -1.45315206 : f32
    %100 = vector.broadcast %cst_34 : f32 to vector<18x5xf32>
    %101 = arith.addf %99, %100 : vector<18x5xf32>
    %102 = arith.mulf %101, %97 : vector<18x5xf32>
    %cst_35 = arith.constant 1.42141378 : f32
    %103 = vector.broadcast %cst_35 : f32 to vector<18x5xf32>
    %104 = arith.addf %102, %103 : vector<18x5xf32>
    %105 = arith.mulf %104, %97 : vector<18x5xf32>
    %cst_36 = arith.constant -0.284496725 : f32
    %106 = vector.broadcast %cst_36 : f32 to vector<18x5xf32>
    %107 = arith.addf %105, %106 : vector<18x5xf32>
    %108 = arith.mulf %107, %97 : vector<18x5xf32>
    %cst_37 = arith.constant 0.254829586 : f32
    %109 = vector.broadcast %cst_37 : f32 to vector<18x5xf32>
    %110 = arith.addf %108, %109 : vector<18x5xf32>
    %111 = arith.mulf %110, %97 : vector<18x5xf32>
    %cst_38 = arith.constant 0.000000e+00 : f32
    %112 = vector.broadcast %cst_38 : f32 to vector<18x5xf32>
    %113 = arith.subf %112, %91 : vector<18x5xf32>
    %114 = arith.mulf %113, %91 : vector<18x5xf32>
    %115 = math.exp %114 : vector<18x5xf32>
    %116 = arith.mulf %111, %115 : vector<18x5xf32>
    %cst_39 = arith.constant 1.000000e+00 : f32
    %117 = vector.broadcast %cst_39 : f32 to vector<18x5xf32>
    %118 = arith.subf %117, %116 : vector<18x5xf32>
    %119 = arith.mulf %90, %118 : vector<18x5xf32>
    %cst_40 = arith.constant 1.000000e+00 : f32
    %120 = vector.broadcast %cst_40 : f32 to vector<18x5xf32>
    %121 = arith.addf %120, %119 : vector<18x5xf32>
    %122 = arith.mulf %83, %121 : vector<18x5xf32>
    %c24 = arith.constant 24 : index
    %c0_41 = arith.constant 0 : index
    %123 = vector.load %arg1[%c24, %c0_41] : memref<216x128xf32, #tpu.memory_space<vmem>>, vector<5x128xf32>
    %124 = vector.extract_strided_slice %123 {offsets = [0, 0], sizes = [5, 5], strides = [1, 1]} : vector<5x128xf32> to vector<5x5xf32>
    %cst_42 = arith.constant dense<0.000000e+00> : vector<18x5xf32>
    %125 = tpu.matmul %122, %124, %cst_42 {dimension_numbers = #tpu.dot_dimension_numbers<[1], [0], [0], [1], [0, 0, 1, 1], [], []>} : vector<18x5xf32>, vector<5x5xf32>, vector<18x5xf32> -> vector<18x5xf32>
    %c5 = arith.constant 5 : index
    %c0_43 = arith.constant 0 : index
    %126 = vector.load %arg1[%c5, %c0_43] : memref<216x128xf32, #tpu.memory_space<vmem>>, vector<1x128xf32>
    %127 = vector.extract_strided_slice %126 {offsets = [0, 0], sizes = [1, 5], strides = [1, 1]} : vector<1x128xf32> to vector<1x5xf32>
    %128 = vector.broadcast %127 : vector<1x5xf32> to vector<18x5xf32>
    %129 = arith.addf %125, %128 : vector<18x5xf32>
    %130 = arith.addf %48, %129 : vector<18x5xf32>
    %131 = vector.extract_strided_slice %130 {offsets = [0, 0], sizes = [18, 1], strides = [1, 1]} : vector<18x5xf32> to vector<18x1xf32>
    %c96 = arith.constant 96 : index
    %c0_44 = arith.constant 0 : index
    %132 = vector.load %arg1[%c96, %c0_44] : memref<216x128xf32, #tpu.memory_space<vmem>>, vector<18x128xf32>
    %133 = vector.extract_strided_slice %132 {offsets = [0, 0], sizes = [18, 32], strides = [1, 1]} : vector<18x128xf32> to vector<18x32xf32>
    %134 = vector.broadcast %131 : vector<18x1xf32> to vector<18x32xf32>
    %135 = arith.mulf %134, %133 : vector<18x32xf32>
    %136 = vector.extract_strided_slice %130 {offsets = [0, 1], sizes = [18, 1], strides = [1, 1]} : vector<18x5xf32> to vector<18x1xf32>
    %c120 = arith.constant 120 : index
    %c0_45 = arith.constant 0 : index
    %137 = vector.load %arg1[%c120, %c0_45] : memref<216x128xf32, #tpu.memory_space<vmem>>, vector<18x128xf32>
    %138 = vector.extract_strided_slice %137 {offsets = [0, 0], sizes = [18, 32], strides = [1, 1]} : vector<18x128xf32> to vector<18x32xf32>
    %139 = vector.broadcast %136 : vector<18x1xf32> to vector<18x32xf32>
    %140 = arith.mulf %139, %138 : vector<18x32xf32>
    %141 = arith.addf %135, %140 : vector<18x32xf32>
    %142 = vector.extract_strided_slice %130 {offsets = [0, 2], sizes = [18, 1], strides = [1, 1]} : vector<18x5xf32> to vector<18x1xf32>
    %c144 = arith.constant 144 : index
    %c0_46 = arith.constant 0 : index
    %143 = vector.load %arg1[%c144, %c0_46] : memref<216x128xf32, #tpu.memory_space<vmem>>, vector<18x128xf32>
    %144 = vector.extract_strided_slice %143 {offsets = [0, 0], sizes = [18, 32], strides = [1, 1]} : vector<18x128xf32> to vector<18x32xf32>
    %145 = vector.broadcast %142 : vector<18x1xf32> to vector<18x32xf32>
    %146 = arith.mulf %145, %144 : vector<18x32xf32>
    %147 = arith.addf %141, %146 : vector<18x32xf32>
    %148 = vector.extract_strided_slice %130 {offsets = [0, 3], sizes = [18, 1], strides = [1, 1]} : vector<18x5xf32> to vector<18x1xf32>
    %c168 = arith.constant 168 : index
    %c0_47 = arith.constant 0 : index
    %149 = vector.load %arg1[%c168, %c0_47] : memref<216x128xf32, #tpu.memory_space<vmem>>, vector<18x128xf32>
    %150 = vector.extract_strided_slice %149 {offsets = [0, 0], sizes = [18, 32], strides = [1, 1]} : vector<18x128xf32> to vector<18x32xf32>
    %151 = vector.broadcast %148 : vector<18x1xf32> to vector<18x32xf32>
    %152 = arith.mulf %151, %150 : vector<18x32xf32>
    %153 = arith.addf %147, %152 : vector<18x32xf32>
    %154 = vector.extract_strided_slice %130 {offsets = [0, 4], sizes = [18, 1], strides = [1, 1]} : vector<18x5xf32> to vector<18x1xf32>
    %c192 = arith.constant 192 : index
    %c0_48 = arith.constant 0 : index
    %155 = vector.load %arg1[%c192, %c0_48] : memref<216x128xf32, #tpu.memory_space<vmem>>, vector<18x128xf32>
    %156 = vector.extract_strided_slice %155 {offsets = [0, 0], sizes = [18, 32], strides = [1, 1]} : vector<18x128xf32> to vector<18x32xf32>
    %157 = vector.broadcast %154 : vector<18x1xf32> to vector<18x32xf32>
    %158 = arith.mulf %157, %156 : vector<18x32xf32>
    %159 = arith.addf %153, %158 : vector<18x32xf32>
    %c88 = arith.constant 88 : index
    %c0_49 = arith.constant 0 : index
    %160 = vector.load %arg1[%c88, %c0_49] : memref<216x128xf32, #tpu.memory_space<vmem>>, vector<2x128xf32>
    %161 = vector.extract_strided_slice %160 {offsets = [0, 0], sizes = [2, 18], strides = [1, 1]} : vector<2x128xf32> to vector<2x18xf32>
    %cst_50 = arith.constant dense<0.000000e+00> : vector<2x32xf32>
    %162 = tpu.matmul %161, %159, %cst_50 {dimension_numbers = #tpu.dot_dimension_numbers<[1], [0], [0], [1], [0, 0, 1, 1], [], []>} : vector<2x18xf32>, vector<18x32xf32>, vector<2x32xf32> -> vector<2x32xf32>
    %c6 = arith.constant 6 : index
    %c0_51 = arith.constant 0 : index
    %163 = vector.load %arg1[%c6, %c0_51] : memref<216x128xf32, #tpu.memory_space<vmem>>, vector<1x128xf32>
    %164 = vector.extract_strided_slice %163 {offsets = [0, 0], sizes = [1, 32], strides = [1, 1]} : vector<1x128xf32> to vector<1x32xf32>
    %165 = vector.broadcast %164 : vector<1x32xf32> to vector<2x32xf32>
    %166 = arith.addf %162, %165 : vector<2x32xf32>
    %cst_52 = arith.constant 0.000000e+00 : f32
    %167 = vector.broadcast %cst_52 : f32 to vector<2x32xf32>
    %168 = arith.maximumf %166, %167 : vector<2x32xf32>
    %c32 = arith.constant 32 : index
    %c0_53 = arith.constant 0 : index
    %169 = vector.load %arg1[%c32, %c0_53] : memref<216x128xf32, #tpu.memory_space<vmem>>, vector<32x128xf32>
    %170 = vector.extract_strided_slice %169 {offsets = [0, 0], sizes = [32, 2], strides = [1, 1]} : vector<32x128xf32> to vector<32x2xf32>
    %cst_54 = arith.constant dense<0.000000e+00> : vector<2x2xf32>
    %171 = tpu.matmul %168, %170, %cst_54 {dimension_numbers = #tpu.dot_dimension_numbers<[1], [0], [0], [1], [0, 0, 1, 1], [], []>} : vector<2x32xf32>, vector<32x2xf32>, vector<2x2xf32> -> vector<2x2xf32>
    %c7 = arith.constant 7 : index
    %c0_55 = arith.constant 0 : index
    %172 = vector.load %arg1[%c7, %c0_55] : memref<216x128xf32, #tpu.memory_space<vmem>>, vector<1x128xf32>
    %173 = vector.extract_strided_slice %172 {offsets = [0, 0], sizes = [1, 2], strides = [1, 1]} : vector<1x128xf32> to vector<1x2xf32>
    %174 = vector.broadcast %173 : vector<1x2xf32> to vector<2x2xf32>
    %175 = arith.addf %171, %174 : vector<2x2xf32>
    %c0_56 = arith.constant 0 : index
    %c0_57 = arith.constant 0 : index
    %176 = vector.load %arg2[%c0_56, %c0_57] : memref<2x2xf32, #tpu.memory_space<vmem>>, vector<2x2xf32>
    tpu.vector_store %arg2[%c0_56, %c0_57], %175 {strides = array<i32>} : memref<2x2xf32, #tpu.memory_space<vmem>>, vector<2x2xf32>,
    return
  }
}

</mosaic_0001>

<llo_original>
// kernel: rvtdsan_forward.1
$region0: #{rvtdsan_forward.1}
  #allocation0 [shape = 'u32[]', space=smem, size = 0x4, offset = 0x4, fixed_abs, tag = 'smem constant byte address 0x4 - core index']
  #allocation1 [shape = 'u32[72,128]{1,0:T(1,128)}', space=vmem, size = 0x9000, scoped, tag = 'internal scratch']
  %s0 = inlined_call_operand.vmem [shape: f32[18,5], index: 0, kind: input, shape index: {}]
  %s1 = inlined_call_operand.hbm [shape: f32[216,128], index: 1, kind: input, shape index: {}]
  %s2 = inlined_call_operand.hbm [shape: f32[2,2], index: 2, kind: output, shape index: {}]
  %s3 = sld [smem:[#allocation0]]
  $region22: #{rvtdsan_forward.1} parent=0
    _
  %s5 = ssub.s32 1, %s3
  %s6 = scalar_select 0, %s5, %s3
  $region1: #{rvtdsan_forward.1} parent=0
    #allocation2 [shape = 'u8[110592]{0}', space=vmem, size = 0x1b000, scoped, tag = 'input window, operand 1, single buffered']
    #allocation3 [shape = 's32[1]{0}', space=sflag, size = 0x4, scoped, tag = 'scoped memory for rvtdsan_forward.1']
    #allocation4 [shape = 's32[1]{0}', space=sflag, size = 0x4, scoped, tag = 'scoped memory for rvtdsan_forward.1']
    #allocation5 [shape = 'u8[1024]{0}', space=vmem, size = 0x400, scoped, tag = 'output window, operand 0, single buffered']
    %7 = vsyncpa [#allocation3], 0
    %8 = vsyncpa [#allocation4], 0
    // Predicated region
    $region2: #{rvtdsan_forward.1} parent=1 // pred_check
      _
    $region3: #{rvtdsan_forward.1} parent=1 // pred_check_branch
      %10 = sbr.rel (0) target = $region5
    $region4: #{rvtdsan_forward.1} parent=1 // pred_region
      _
    $region5: #{rvtdsan_forward.1} parent=1 // pred_fallthru
      _
    // Predicated region
    $region6: #{rvtdsan_forward.1} parent=1 // pred_check
      _
    $region7: #{rvtdsan_forward.1} parent=1 // pred_check_branch
      %12 = sbr.rel (0) target = $region9
    $region8: #{rvtdsan_forward.1} parent=1 // pred_region
      %14 = vsyncadd [#allocation3], 0
      %s15 = sshll.u32 %s1, 4
      %s16 = int_to_ptr.hbm [resolvable:$true] %s15
      %s17 = sshll.u32 [#allocation2], 4
      %s18 = int_to_ptr.vmem [resolvable:$true] %s17
      %23 = dma.hbm_to_vmem [thread:$0]  %s16, 3456, %s18, [#allocation3], 128, 128, 8
    $region9: #{rvtdsan_forward.1} parent=1 // pred_fallthru
      _
    // Predicated region
    $region10: #{rvtdsan_forward.1} parent=1 // pred_check
      _
    $region11: #{rvtdsan_forward.1} parent=1 // pred_check_branch
      %25 = sbr.rel (0) target = $region13
    $region12: #{rvtdsan_forward.1} parent=1 // pred_region
      %27 = dma.done [#allocation3], 3456
    $region13: #{rvtdsan_forward.1} parent=1 // pred_fallthru
      _
    %v28 = vld [vmem:[%s0] sm:$0xff]
    %v29 = vld [vmem:[%s0 + $0x8] sm:$0xff]
    %v30 = vld [vmem:[%s0 + $0x10] sm:$0x3]
    %v31 = vld [vmem:[#allocation2] sm:$0x1]
    %v32 = vld [vmem:[#allocation2 + $0x1] sm:$0x1]
    %vm33 = vcmask 39936
    %v34 = vsel %vm33, %v28, 0.0
    %35 = vadd.xlane.f32.xlu0 %v34
    %v36 = vpop.xlane.xlu0 %35
    %v37 = vsel %vm33, %v29, 0.0
    %38 = vadd.xlane.f32.xlu0 %v37
    %v39 = vpop.xlane.xlu0 %38
    %vm40 = vcmask 33792
    %v41 = vsel %vm40, %v30, 0.0
    %42 = vadd.xlane.f32.xlu0 %v41
    %v43 = vpop.xlane.xlu0 %42
    %v44 = vrcp.pop 5.0
    %v45 = vmul.f32 5.0, %v44
    %v46 = vsub.f32 1.0, %v45
    %v47 = vmul.f32 %v44, %v46
    %v48 = vadd.f32 %v44, %v47
    %vm49 = vweird.f32 %v44
    %v50 = vsel %vm49, %v44, %v48
    %v51 = vmul.f32 %v36, %v50
    %v52 = vmul.f32 %v39, %v50
    %v53 = vmul.f32 %v43, %v50
    %v54 = vmul.f32 %v28, %v28
    %v55 = vmul.f32 %v29, %v29
    %v56 = vmul.f32 %v30, %v30
    %v57 = vsel %vm33, %v54, 0.0
    %58 = vadd.xlane.f32.xlu0 %v57
    %v59 = vpop.xlane.xlu0 %58
    %v60 = vsel %vm33, %v55, 0.0
    %61 = vadd.xlane.f32.xlu0 %v60
    %v62 = vpop.xlane.xlu0 %61
    %v63 = vsel %vm40, %v56, 0.0
    %64 = vadd.xlane.f32.xlu0 %v63
    %v65 = vpop.xlane.xlu0 %64
    %v66 = vmul.f32 %v59, %v50
    %v67 = vmul.f32 %v62, %v50
    %v68 = vmul.f32 %v65, %v50
    %v69 = vmul.f32 %v51, %v51
    %v70 = vmul.f32 %v52, %v52
    %v71 = vmul.f32 %v53, %v53
    %v72 = vsub.f32 %v66, %v69
    %v73 = vsub.f32 %v67, %v70
    %v74 = vsub.f32 %v68, %v71
    %v75 = vsub.f32 %v28, %v51
    %v76 = vsub.f32 %v29, %v52
    %v77 = vsub.f32 %v30, %v53
    %v78 = vadd.f32 %v72, 1e-05
    %v79 = vadd.f32 %v73, 1e-05
    %v80 = vadd.f32 %v74, 1e-05
    %v81 = vrsqrt.pop %v78
    %v82 = vmul.f32 %v81, %v78
    %v83 = vmul.f32 %v82, %v81
    %v84 = vmul.f32 0.5, %v83
    %v85 = vsub.f32 1.5, %v84
    %v86 = vmul.f32 %v81, %v85
    %vm87 = vweird.f32 %v78
    %vm88 = vweird.f32 %v81
    %vm89 = vmor %vm87, %vm88
    %v90 = vsel %vm89, %v81, %v86
    %v91 = vrsqrt.pop %v79
    %v92 = vmul.f32 %v91, %v79
    %v93 = vmul.f32 %v92, %v91
    %v94 = vmul.f32 0.5, %v93
    %v95 = vsub.f32 1.5, %v94
    %v96 = vmul.f32 %v91, %v95
    %vm97 = vweird.f32 %v79
    %vm98 = vweird.f32 %v91
    %vm99 = vmor %vm97, %vm98
    %v100 = vsel %vm99, %v91, %v96
    %v101 = vrsqrt.pop %v80
    %v102 = vmul.f32 %v101, %v80
    %v103 = vmul.f32 %v102, %v101
    %v104 = vmul.f32 0.5, %v103
    %v105 = vsub.f32 1.5, %v104
    %v106 = vmul.f32 %v101, %v105
    %vm107 = vweird.f32 %v80
    %vm108 = vweird.f32 %v101
    %vm109 = vmor %vm107, %vm108
    %v110 = vsel %vm109, %v101, %v106
    %v111 = vmul.f32 %v75, %v90
    %v112 = vmul.f32 %v76, %v100
    %v113 = vmul.f32 %v77, %v110
    %v114 = vperm.slane %v31, 0
    %v115 = vmul.f32 %v111, %v114
    %v116 = vmul.f32 %v112, %v114
    %v117 = vmul.f32 %v113, %v114
    %v118 = vperm.slane %v32, 0
    %v119 = vadd.f32 %v115, %v118
    %v120 = vadd.f32 %v116, %v118
    %v121 = vadd.f32 %v117, %v118
    %v122 = vld [vmem:[#allocation2 + $0x8] sm:$0x1f]
    %v124 = vsel %vm33, %v119, 0
    %v127 = vsel %vm33, %v120, 0
    %v130 = vsel %vm33, %v121, 0
    %vm132 = vcmask 1044480
    %v134 = vsel %vm132, %v122, 0
    %136 = vmatpush.msra.mxu0 0.0
    %137 = vmatpush.msra.mxu0 0.0
    %138 = vmatpush.msra.mxu0 0.0
    %139 = vmatpush.msra.mxu0 0.0
    %140 = vmatpush.msra.mxu0 0.0
    %141 = vmatpush.msra.mxu0 0.0
    %142 = vmatpush.msra.mxu0 0.0
    %143 = vmatpush.msra.mxu0 0.0
    %144 = vmatpush.msra.mxu0 0.0
    %145 = vmatpush.msra.mxu0 0.0
    %146 = vmatpush.msra.mxu0 0.0
    %147 = vmatpush.msra.mxu0 0.0
    %148 = vmatpush.msra.mxu0 0.0
    %149 = vmatpush.msra.mxu0 0.0
    %150 = vmatpush.msra.mxu0 0.0
    %151 = vmatpush.msra.mxu0 %v134
    %152 = vmatmul.f32.gmra.mxu0 %v124
    %v153 = vpop.f32.mrf.mxu0
    %v154 = vadd.f32 0.0, %v153
    %155 = vmatmul.f32.gmra.mxu0 %v127
    %v156 = vpop.f32.mrf.mxu0
    %v157 = vadd.f32 0.0, %v156
    %158 = vmatmul.f32.gmra.mxu0 %v130
    %v159 = vpop.f32.mrf.mxu0
    %v160 = vadd.f32 0.0, %v159
    %161 = vdwg.mxu0
    %v162 = vld [vmem:[#allocation2 + $0x40] sm:$0xff]
    %v163 = vld [vmem:[#allocation2 + $0x48] sm:$0xff]
    %v164 = vld [vmem:[#allocation2 + $0x50] sm:$0x3]
    %168 = vrot.lane.b32.xlu0 %v154, 123
    %v169 = vpop.permute.xlu0 %168
    %170 = vrot.lane.b32.xlu0 %v157, 123
    %v171 = vpop.permute.xlu0 %170
    %172 = vrot.lane.b32.xlu0 %v160, 123
    %v173 = vpop.permute.xlu0 %172
    %v174 = vsel %vm33, %v154, 0
    %v176 = vsel %vm33, %v157, 0
    %v178 = vsel %vm33, %v160, 0
    %v180 = vsel %vm33, %v169, 0
    %v182 = vsel %vm33, %v171, 0
    %v184 = vsel %vm33, %v173, 0
    %186 = vmatpush.xpose.msra.mxu0 0.0
    %187 = vmatpush.xpose.msra.mxu0 0.0
    %188 = vmatpush.xpose.msra.mxu0 0.0
    %189 = vmatpush.xpose.msra.mxu0 0.0
    %190 = vmatpush.xpose.msra.mxu0 0.0
    %191 = vmatpush.xpose.msra.mxu0 0.0
    %192 = vmatpush.xpose.msra.mxu0 0.0
    %193 = vmatpush.xpose.msra.mxu0 0.0
    %194 = vmatpush.xpose.msra.mxu0 0.0
    %195 = vmatpush.xpose.msra.mxu0 0.0
    %196 = vmatpush.xpose.msra.mxu0 0.0
    %197 = vmatpush.xpose.msra.mxu0 0.0
    %198 = vmatpush.xpose.msra.mxu0 0.0
    %199 = vmatpush.xpose.msra.mxu0 %v184
    %200 = vmatpush.xpose.msra.mxu0 %v182
    %201 = vmatpush.xpose.msra.mxu0 %v180
    %202 = vmatmul.f32.gmra.mxu0 %v174
    %v203 = vpop.f32.mrf.mxu0
    %v204 = vadd.f32 %v162, %v203
    %205 = vmatmul.f32.gmra.mxu0 %v176
    %v206 = vpop.f32.mrf.mxu0
    %v207 = vadd.f32 %v163, %v206
    %208 = vmatmul.f32.gmra.mxu0 %v178
    %v209 = vpop.f32.mrf.mxu0
    %v210 = vadd.f32 %v164, %v209
    %211 = vdwg.mxu0
    %vm212 = vcmask 146432
    %v213 = vsel %vm212, %v204, -inf
    %214 = vmax.xlane.f32.xlu0 %v213
    %v215 = vpop.xlane.xlu0 %214
    %v216 = vsel %vm212, %v207, -inf
    %217 = vmax.xlane.f32.xlu0 %v216
    %v218 = vpop.xlane.xlu0 %217
    %vm219 = vcmask 140288
    %v220 = vsel %vm219, %v210, -inf
    %221 = vmax.xlane.f32.xlu0 %v220
    %v222 = vpop.xlane.xlu0 %221
    %v223 = vsub.f32 %v204, %v215
    %v224 = vsub.f32 %v207, %v218
    %v225 = vsub.f32 %v210, %v222
    %v226 = vmul.f32 %v223, 1.442695
    %v227 = vpow.pop %v226
    %v228 = vmul.f32 %v224, 1.442695
    %v229 = vpow.pop %v228
    %v230 = vmul.f32 %v225, 1.442695
    %v231 = vpow.pop %v230
    %v232 = vsel %vm212, %v227, 0.0
    %233 = vadd.xlane.f32.xlu0 %v232
    %v234 = vpop.xlane.xlu0 %233
    %v235 = vsel %vm212, %v229, 0.0
    %236 = vadd.xlane.f32.xlu0 %v235
    %v237 = vpop.xlane.xlu0 %236
    %v238 = vsel %vm219, %v231, 0.0
    %239 = vadd.xlane.f32.xlu0 %v238
    %v240 = vpop.xlane.xlu0 %239
    %v241 = vrcp.pop %v234
    %v242 = vrcp.pop %v237
    %v243 = vrcp.pop %v240
    %v244 = vmul.f32 %v227, %v241
    %v245 = vmul.f32 %v229, %v242
    %v246 = vmul.f32 %v231, %v243
    %247 = vrot.lane.b32.xlu0 %v154, 118
    %v248 = vpop.permute.xlu0 %247
    %249 = vrot.lane.b32.xlu0 %v157, 118
    %v250 = vpop.permute.xlu0 %249
    %251 = vrot.lane.b32.xlu0 %v160, 118
    %v252 = vpop.permute.xlu0 %251
    %v256 = vsel %vm212, %v244, 0
    %v259 = vsel %vm212, %v245, 0
    %v262 = vsel %vm212, %v246, 0
    %vm264 = vcmask 1041408
    %v265 = vsel %vm264, %v252, 0
    %267 = vmatpush.msra.mxu0 0.0
    %268 = vmatpush.msra.mxu0 0.0
    %269 = vmatpush.msra.mxu0 0.0
    %270 = vmatpush.msra.mxu0 0.0
    %271 = vmatpush.msra.mxu0 0.0
    %272 = vmatpush.msra.mxu0 0.0
    %273 = vmatpush.msra.mxu0 0.0
    %274 = vmatpush.msra.mxu0 0.0
    %275 = vmatpush.msra.mxu0 0.0
    %276 = vmatpush.msra.mxu0 0.0
    %277 = vmatpush.msra.mxu0 0.0
    %278 = vmatpush.msra.mxu0 0.0
    %279 = vmatpush.msra.mxu0 0.0
    %280 = vmatpush.msra.mxu0 %v265
    %281 = vmatpush.msra.mxu0 %v250
    %282 = vmatpush.msra.mxu0 %v248
    %283 = vmatmul.f32.gmra.mxu0 %v256
    %v284 = vpop.f32.mrf.mxu0
    %v285 = vadd.f32 0.0, %v284
    %286 = vmatmul.f32.gmra.mxu0 %v259
    %v287 = vpop.f32.mrf.mxu0
    %v288 = vadd.f32 0.0, %v287
    %289 = vmatmul.f32.gmra.mxu0 %v262
    %v290 = vpop.f32.mrf.mxu0
    %v291 = vadd.f32 0.0, %v290
    %292 = vdwg.mxu0
    %v293 = vadd.f32 %v28, %v285
    %v294 = vadd.f32 %v29, %v288
    %v295 = vadd.f32 %v30, %v291
    %v296 = vld [vmem:[#allocation2 + $0x2] sm:$0x1]
    %v297 = vld [vmem:[#allocation2 + $0x3] sm:$0x1]
    %v298 = vsel %vm33, %v293, 0.0
    %299 = vadd.xlane.f32.xlu0 %v298
    %v300 = vpop.xlane.xlu0 %299
    %v301 = vsel %vm33, %v294, 0.0
    %302 = vadd.xlane.f32.xlu0 %v301
    %v303 = vpop.xlane.xlu0 %302
    %v304 = vsel %vm40, %v295, 0.0
    %305 = vadd.xlane.f32.xlu0 %v304
    %v306 = vpop.xlane.xlu0 %305
    %v307 = vmul.f32 %v300, %v50
    %v308 = vmul.f32 %v303, %v50
    %v309 = vmul.f32 %v306, %v50
    %v310 = vmul.f32 %v293, %v293
    %v311 = vmul.f32 %v294, %v294
    %v312 = vmul.f32 %v295, %v295
    %v313 = vsel %vm33, %v310, 0.0
    %314 = vadd.xlane.f32.xlu0 %v313
    %v315 = vpop.xlane.xlu0 %314
    %v316 = vsel %vm33, %v311, 0.0
    %317 = vadd.xlane.f32.xlu0 %v316
    %v318 = vpop.xlane.xlu0 %317
    %v319 = vsel %vm40, %v312, 0.0
    %320 = vadd.xlane.f32.xlu0 %v319
    %v321 = vpop.xlane.xlu0 %320
    %v322 = vmul.f32 %v315, %v50
    %v323 = vmul.f32 %v318, %v50
    %v324 = vmul.f32 %v321, %v50
    %v325 = vmul.f32 %v307, %v307
    %v326 = vmul.f32 %v308, %v308
    %v327 = vmul.f32 %v309, %v309
    %v328 = vsub.f32 %v322, %v325
    %v329 = vsub.f32 %v323, %v326
    %v330 = vsub.f32 %v324, %v327
    %v331 = vsub.f32 %v293, %v307
    %v332 = vsub.f32 %v294, %v308
    %v333 = vsub.f32 %v295, %v309
    %v334 = vadd.f32 %v328, 1e-05
    %v335 = vadd.f32 %v329, 1e-05
    %v336 = vadd.f32 %v330, 1e-05
    %v337 = vrsqrt.pop %v334
    %v338 = vmul.f32 %v337, %v334
    %v339 = vmul.f32 %v338, %v337
    %v340 = vmul.f32 0.5, %v339
    %v341 = vsub.f32 1.5, %v340
    %v342 = vmul.f32 %v337, %v341
    %vm343 = vweird.f32 %v334
    %vm344 = vweird.f32 %v337
    %vm345 = vmor %vm343, %vm344
    %v346 = vsel %vm345, %v337, %v342
    %v347 = vrsqrt.pop %v335
    %v348 = vmul.f32 %v347, %v335
    %v349 = vmul.f32 %v348, %v347
    %v350 = vmul.f32 0.5, %v349
    %v351 = vsub.f32 1.5, %v350
    %v352 = vmul.f32 %v347, %v351
    %vm353 = vweird.f32 %v335
    %vm354 = vweird.f32 %v347
    %vm355 = vmor %vm353, %vm354
    %v356 = vsel %vm355, %v347, %v352
    %v357 = vrsqrt.pop %v336
    %v358 = vmul.f32 %v357, %v336
    %v359 = vmul.f32 %v358, %v357
    %v360 = vmul.f32 0.5, %v359
    %v361 = vsub.f32 1.5, %v360
    %v362 = vmul.f32 %v357, %v361
    %vm363 = vweird.f32 %v336
    %vm364 = vweird.f32 %v357
    %vm365 = vmor %vm363, %vm364
    %v366 = vsel %vm365, %v357, %v362
    %v367 = vmul.f32 %v331, %v346
    %v368 = vmul.f32 %v332, %v356
    %v369 = vmul.f32 %v333, %v366
    %v370 = vperm.slane %v296, 0
    %v371 = vmul.f32 %v367, %v370
    %v372 = vmul.f32 %v368, %v370
    %v373 = vmul.f32 %v369, %v370
    %v374 = vperm.slane %v297, 0
    %v375 = vadd.f32 %v371, %v374
    %v376 = vadd.f32 %v372, %v374
    %v377 = vadd.f32 %v373, %v374
    %v378 = vld [vmem:[#allocation2 + $0x10] sm:$0x1f]
    %v379 = vld [vmem:[#allocation2 + $0x4] sm:$0x1]
    %v380 = vperm.slane %v379, 0
    %v382 = vsel %vm33, %v375, 0
    %v385 = vsel %vm33, %v376, 0
    %v388 = vsel %vm33, %v377, 0
    %v391 = vsel %vm132, %v378, 0
    %393 = vmatpush.msra.mxu0 0.0
    %394 = vmatpush.msra.mxu0 0.0
    %395 = vmatpush.msra.mxu0 0.0
    %396 = vmatpush.msra.mxu0 0.0
    %397 = vmatpush.msra.mxu0 0.0
    %398 = vmatpush.msra.mxu0 0.0
    %399 = vmatpush.msra.mxu0 0.0
    %400 = vmatpush.msra.mxu0 0.0
    %401 = vmatpush.msra.mxu0 0.0
    %402 = vmatpush.msra.mxu0 0.0
    %403 = vmatpush.msra.mxu0 0.0
    %404 = vmatpush.msra.mxu0 0.0
    %405 = vmatpush.msra.mxu0 0.0
    %406 = vmatpush.msra.mxu0 0.0
    %407 = vmatpush.msra.mxu0 0.0
    %408 = vmatpush.msra.mxu0 %v391
    %409 = vmatmul.f32.gmra.mxu0 %v382
    %v410 = vpop.f32.mrf.mxu0
    %v411 = vadd.f32 %v380, %v410
    %412 = vmatmul.f32.gmra.mxu0 %v385
    %v413 = vpop.f32.mrf.mxu0
    %v414 = vadd.f32 %v380, %v413
    %415 = vmatmul.f32.gmra.mxu0 %v388
    %v416 = vpop.f32.mrf.mxu0
    %v417 = vadd.f32 %v380, %v416
    %418 = vdwg.mxu0
    %v419 = vmul.f32 %v411, 0.5
    %v420 = vmul.f32 %v414, 0.5
    %v421 = vmul.f32 %v417, 0.5
    %v422 = vmul.f32 %v411, 0.70710677
    %v423 = vmul.f32 %v414, 0.70710677
    %v424 = vmul.f32 %v417, 0.70710677
    %vm425 = vcmp.ge.f32.partialorder %v422, 0.0
    %vm426 = vcmp.ge.f32.partialorder %v423, 0.0
    %vm427 = vcmp.ge.f32.partialorder %v424, 0.0
    %v428 = vsel %vm425, 1.0, -1.0
    %v429 = vsel %vm426, 1.0, -1.0
    %v430 = vsel %vm427, 1.0, -1.0
    %v431 = vand.u32 2147483647, %v422
    %v432 = vand.u32 2147483647, %v423
    %v433 = vand.u32 2147483647, %v424
    %v434 = vmul.f32 %v431, 0.3275911
    %v435 = vmul.f32 %v432, 0.3275911
    %v436 = vmul.f32 %v433, 0.3275911
    %v437 = vadd.f32 %v434, 1.0
    %v438 = vadd.f32 %v435, 1.0
    %v439 = vadd.f32 %v436, 1.0
    %v440 = vrcp.pop %v437
    %v441 = vmul.f32 %v437, %v440
    %v442 = vsub.f32 1.0, %v441
    %v443 = vmul.f32 %v440, %v442
    %v444 = vadd.f32 %v440, %v443
    %vm445 = vweird.f32 %v437
    %vm446 = vweird.f32 %v440
    %vm447 = vmor %vm445, %vm446
    %v448 = vsel %vm447, %v440, %v444
    %v449 = vand.u32 2147483647, %v437
    %vm450 = vcmp.eq.f32.partialorder %v449, 8.507059e+37
    %v451 = vand.u32 %v437, 2147483648
    %v452 = vor.u32 1.1754944e-38, %v451
    %v453 = vsel %vm450, %v452, %v448
    %v454 = vmul.f32 1.0, %v453
    %v455 = vrcp.pop %v438
    %v456 = vmul.f32 %v438, %v455
    %v457 = vsub.f32 1.0, %v456
    %v458 = vmul.f32 %v455, %v457
    %v459 = vadd.f32 %v455, %v458
    %vm460 = vweird.f32 %v438
    %vm461 = vweird.f32 %v455
    %vm462 = vmor %vm460, %vm461
    %v463 = vsel %vm462, %v455, %v459
    %v464 = vand.u32 2147483647, %v438
    %vm465 = vcmp.eq.f32.partialorder %v464, 8.507059e+37
    %v466 = vand.u32 %v438, 2147483648
    %v467 = vor.u32 1.1754944e-38, %v466
    %v468 = vsel %vm465, %v467, %v463
    %v469 = vmul.f32 1.0, %v468
    %v470 = vrcp.pop %v439
    %v471 = vmul.f32 %v439, %v470
    %v472 = vsub.f32 1.0, %v471
    %v473 = vmul.f32 %v470, %v472
    %v474 = vadd.f32 %v470, %v473
    %vm475 = vweird.f32 %v439
    %vm476 = vweird.f32 %v470
    %vm477 = vmor %vm475, %vm476
    %v478 = vsel %vm477, %v470, %v474
    %v479 = vand.u32 2147483647, %v439
    %vm480 = vcmp.eq.f32.partialorder %v479, 8.507059e+37
    %v481 = vand.u32 %v439, 2147483648
    %v482 = vor.u32 1.1754944e-38, %v481
    %v483 = vsel %vm480, %v482, %v478
    %v484 = vmul.f32 1.0, %v483
    %v485 = vmul.f32 %v454, 1.0614054
    %v486 = vmul.f32 %v469, 1.0614054
    %v487 = vmul.f32 %v484, 1.0614054
    %v488 = vadd.f32 %v485, -1.4531521
    %v489 = vadd.f32 %v486, -1.4531521
    %v490 = vadd.f32 %v487, -1.4531521
    %v491 = vmul.f32 %v488, %v454
    %v492 = vmul.f32 %v489, %v469
    %v493 = vmul.f32 %v490, %v484
    %v494 = vadd.f32 %v491, 1.4214138
    %v495 = vadd.f32 %v492, 1.4214138
    %v496 = vadd.f32 %v493, 1.4214138
    %v497 = vmul.f32 %v494, %v454
    %v498 = vmul.f32 %v495, %v469
    %v499 = vmul.f32 %v496, %v484
    %v500 = vadd.f32 %v497, -0.28449672
    %v501 = vadd.f32 %v498, -0.28449672
    %v502 = vadd.f32 %v499, -0.28449672
    %v503 = vmul.f32 %v500, %v454
    %v504 = vmul.f32 %v501, %v469
    %v505 = vmul.f32 %v502, %v484
    %v506 = vadd.f32 %v503, 0.2548296
    %v507 = vadd.f32 %v504, 0.2548296
    %v508 = vadd.f32 %v505, 0.2548296
    %v509 = vmul.f32 %v506, %v454
    %v510 = vmul.f32 %v507, %v469
    %v511 = vmul.f32 %v508, %v484
    %v512 = vsub.f32 0.0, %v431
    %v513 = vsub.f32 0.0, %v432
    %v514 = vsub.f32 0.0, %v433
    %v515 = vmul.f32 %v512, %v431
    %v516 = vmul.f32 %v513, %v432
    %v517 = vmul.f32 %v514, %v433
    %v518 = vmul.f32 %v515, 1.442695
    %v519 = vpow.pop %v518
    %v520 = vmul.f32 %v516, 1.442695
    %v521 = vpow.pop %v520
    %v522 = vmul.f32 %v517, 1.442695
    %v523 = vpow.pop %v522
    %v524 = vmul.f32 %v509, %v519
    %v525 = vmul.f32 %v510, %v521
    %v526 = vmul.f32 %v511, %v523
    %v527 = vsub.f32 1.0, %v524
    %v528 = vsub.f32 1.0, %v525
    %v529 = vsub.f32 1.0, %v526
    %v530 = vmul.f32 %v428, %v527
    %v531 = vmul.f32 %v429, %v528
    %v532 = vmul.f32 %v430, %v529
    %v533 = vadd.f32 %v530, 1.0
    %v534 = vadd.f32 %v531, 1.0
    %v535 = vadd.f32 %v532, 1.0
    %v536 = vmul.f32 %v419, %v533
    %v537 = vmul.f32 %v420, %v534
    %v538 = vmul.f32 %v421, %v535
    %v539 = vld [vmem:[#allocation2 + $0x18] sm:$0x1f]
    %v540 = vld [vmem:[#allocation2 + $0x5] sm:$0x1]
    %v541 = vperm.slane %v540, 0
    %v543 = vsel %vm33, %v536, 0
    %v546 = vsel %vm33, %v537, 0
    %v549 = vsel %vm33, %v538, 0
    %v552 = vsel %vm132, %v539, 0
    %554 = vmatpush.msra.mxu0 0.0
    %555 = vmatpush.msra.mxu0 0.0
    %556 = vmatpush.msra.mxu0 0.0
    %557 = vmatpush.msra.mxu0 0.0
    %558 = vmatpush.msra.mxu0 0.0
    %559 = vmatpush.msra.mxu0 0.0
    %560 = vmatpush.msra.mxu0 0.0
    %561 = vmatpush.msra.mxu0 0.0
    %562 = vmatpush.msra.mxu0 0.0
    %563 = vmatpush.msra.mxu0 0.0
    %564 = vmatpush.msra.mxu0 0.0
    %565 = vmatpush.msra.mxu0 0.0
    %566 = vmatpush.msra.mxu0 0.0
    %567 = vmatpush.msra.mxu0 0.0
    %568 = vmatpush.msra.mxu0 0.0
    %569 = vmatpush.msra.mxu0 %v552
    %570 = vmatmul.f32.gmra.mxu0 %v543
    %v571 = vpop.f32.mrf.mxu0
    %v572 = vadd.f32 %v541, %v571
    %573 = vmatmul.f32.gmra.mxu0 %v546
    %v574 = vpop.f32.mrf.mxu0
    %v575 = vadd.f32 %v541, %v574
    %576 = vmatmul.f32.gmra.mxu0 %v549
    %v577 = vpop.f32.mrf.mxu0
    %v578 = vadd.f32 %v541, %v577
    %579 = vdwg.mxu0
    %v580 = vadd.f32 %v293, %v572
    %v581 = vadd.f32 %v294, %v575
    %v582 = vadd.f32 %v295, %v578
    %v583 = vld [vmem:[#allocation2 + $0x60] sm:$0xff]
    %v584 = vld [vmem:[#allocation2 + $0x68] sm:$0xff]
    %v585 = vld [vmem:[#allocation2 + $0x70] sm:$0x3]
    %587 = vset.pattern.permute.xlu0 0
    %588 = vperm.xlu0 %587, %v580
    %v589 = vpop.permute.xlu0 %588
    %592 = vset.pattern.permute.xlu0 0
    %593 = vperm.xlu0 %592, %v581
    %v594 = vpop.permute.xlu0 %593
    %597 = vset.pattern.permute.xlu0 0
    %598 = vperm.xlu0 %597, %v582
    %v599 = vpop.permute.xlu0 %598
    %v601 = vmul.f32 %v589, %v583
    %v602 = vmul.f32 %v594, %v584
    %v603 = vmul.f32 %v599, %v585
    %v604 = vld [vmem:[#allocation2 + $0x78] sm:$0xff]
    %v605 = vld [vmem:[#allocation2 + $0x80] sm:$0xff]
    %v606 = vld [vmem:[#allocation2 + $0x88] sm:$0x3]
    %607 = vset.pattern.permute.xlu0 1
    %608 = vperm.xlu0 %607, %v580
    %v609 = vpop.permute.xlu0 %608
    %611 = vset.pattern.permute.xlu0 1
    %612 = vperm.xlu0 %611, %v581
    %v613 = vpop.permute.xlu0 %612
    %615 = vset.pattern.permute.xlu0 1
    %616 = vperm.xlu0 %615, %v582
    %v617 = vpop.permute.xlu0 %616
    %v619 = vmul.f32 %v609, %v604
    %v620 = vmul.f32 %v613, %v605
    %v621 = vmul.f32 %v617, %v606
    %v622 = vadd.f32 %v601, %v619
    %v623 = vadd.f32 %v602, %v620
    %v624 = vadd.f32 %v603, %v621
    %v625 = vld [vmem:[#allocation2 + $0x90] sm:$0xff]
    %v626 = vld [vmem:[#allocation2 + $0x98] sm:$0xff]
    %v627 = vld [vmem:[#allocation2 + $0xa0] sm:$0x3]
    %628 = vset.pattern.permute.xlu0 2
    %629 = vperm.xlu0 %628, %v580
    %v630 = vpop.permute.xlu0 %629
    %632 = vset.pattern.permute.xlu0 2
    %633 = vperm.xlu0 %632, %v581
    %v634 = vpop.permute.xlu0 %633
    %636 = vset.pattern.permute.xlu0 2
    %637 = vperm.xlu0 %636, %v582
    %v638 = vpop.permute.xlu0 %637
    %v640 = vmul.f32 %v630, %v625
    %v641 = vmul.f32 %v634, %v626
    %v642 = vmul.f32 %v638, %v627
    %v643 = vadd.f32 %v622, %v640
    %v644 = vadd.f32 %v623, %v641
    %v645 = vadd.f32 %v624, %v642
    %v646 = vld [vmem:[#allocation2 + $0xa8] sm:$0xff]
    %v647 = vld [vmem:[#allocation2 + $0xb0] sm:$0xff]
    %v648 = vld [vmem:[#allocation2 + $0xb8] sm:$0x3]
    %649 = vset.pattern.permute.xlu0 3
    %650 = vperm.xlu0 %649, %v580
    %v651 = vpop.permute.xlu0 %650
    %653 = vset.pattern.permute.xlu0 3
    %654 = vperm.xlu0 %653, %v581
    %v655 = vpop.permute.xlu0 %654
    %657 = vset.pattern.permute.xlu0 3
    %658 = vperm.xlu0 %657, %v582
    %v659 = vpop.permute.xlu0 %658
    %v661 = vmul.f32 %v651, %v646
    %v662 = vmul.f32 %v655, %v647
    %v663 = vmul.f32 %v659, %v648
    %v664 = vadd.f32 %v643, %v661
    %v665 = vadd.f32 %v644, %v662
    %v666 = vadd.f32 %v645, %v663
    %v667 = vld [vmem:[#allocation2 + $0xc0] sm:$0xff]
    %v668 = vld [vmem:[#allocation2 + $0xc8] sm:$0xff]
    %v669 = vld [vmem:[#allocation2 + $0xd0] sm:$0x3]
    %670 = vset.pattern.permute.xlu0 4
    %671 = vperm.xlu0 %670, %v580
    %v672 = vpop.permute.xlu0 %671
    %674 = vset.pattern.permute.xlu0 4
    %675 = vperm.xlu0 %674, %v581
    %v676 = vpop.permute.xlu0 %675
    %678 = vset.pattern.permute.xlu0 4
    %679 = vperm.xlu0 %678, %v582
    %v680 = vpop.permute.xlu0 %679
    %v682 = vmul.f32 %v672, %v667
    %v683 = vmul.f32 %v676, %v668
    %v684 = vmul.f32 %v680, %v669
    %v685 = vadd.f32 %v664, %v682
    %v686 = vadd.f32 %v665, %v683
    %v687 = vadd.f32 %v666, %v684
    %v688 = vld [vmem:[#allocation2 + $0x58] sm:$0x3]
    %v689 = vld [vmem:[#allocation2 + $0x6] sm:$0x1]
    %v690 = vperm.slane %v689, 0
    %v692 = vsel %vm212, %v688, 0
    %v695 = vsel %vm264, %v687, 0
    %697 = vmatpush.msra.mxu0 0.0
    %698 = vmatpush.msra.mxu0 0.0
    %699 = vmatpush.msra.mxu0 0.0
    %700 = vmatpush.msra.mxu0 0.0
    %701 = vmatpush.msra.mxu0 0.0
    %702 = vmatpush.msra.mxu0 0.0
    %703 = vmatpush.msra.mxu0 0.0
    %704 = vmatpush.msra.mxu0 0.0
    %705 = vmatpush.msra.mxu0 0.0
    %706 = vmatpush.msra.mxu0 0.0
    %707 = vmatpush.msra.mxu0 0.0
    %708 = vmatpush.msra.mxu0 0.0
    %709 = vmatpush.msra.mxu0 0.0
    %710 = vmatpush.msra.mxu0 %v695
    %711 = vmatpush.msra.mxu0 %v686
    %712 = vmatpush.msra.mxu0 %v685
    %713 = vmatmul.f32.gmra.mxu0 %v692
    %v714 = vpop.f32.mrf.mxu0
    %v715 = vadd.f32 %v690, %v714
    %716 = vdwg.mxu0
    %v717 = vmax.f32 %v715, 0.0
    %v718 = vld [vmem:[#allocation2 + $0x20] sm:$0xff]
    %v719 = vld [vmem:[#allocation2 + $0x28] sm:$0xff]
    %v720 = vld [vmem:[#allocation2 + $0x30] sm:$0xff]
    %v721 = vld [vmem:[#allocation2 + $0x38] sm:$0xff]
    %v722 = vld [vmem:[#allocation2 + $0x7] sm:$0x1]
    %v723 = vperm.slane %v722, 0
    %vm724 = vcmask 261120
    %v726 = vsel %vm724, %v717, 0
    %728 = vmatpush.msra.mxu0 0.0
    %729 = vmatpush.msra.mxu0 0.0
    %730 = vmatpush.msra.mxu0 0.0
    %731 = vmatpush.msra.mxu0 0.0
    %732 = vmatpush.msra.mxu0 0.0
    %733 = vmatpush.msra.mxu0 0.0
    %734 = vmatpush.msra.mxu0 0.0
    %735 = vmatpush.msra.mxu0 0.0
    %736 = vmatpush.msra.mxu0 0.0
    %737 = vmatpush.msra.mxu0 0.0
    %738 = vmatpush.msra.mxu0 0.0
    %739 = vmatpush.msra.mxu0 0.0
    %740 = vmatpush.msra.mxu0 %v721
    %741 = vmatpush.msra.mxu0 %v720
    %742 = vmatpush.msra.mxu0 %v719
    %743 = vmatpush.msra.mxu0 %v718
    %744 = vmatmul.f32.gmra.mxu0 %v726
    %v745 = vpop.f32.mrf.mxu0
    %v746 = vadd.f32 %v723, %v745
    %747 = vdwg.mxu0
    %vm748 = vcmask 9216
    %749 = vst.msk [vmem:[#allocation5] sm:$0x3] %vm748, %v746
    // Predicated region
    $region14: #{rvtdsan_forward.1} parent=1 // pred_check
      _
    $region15: #{rvtdsan_forward.1} parent=1 // pred_check_branch
      %751 = sbr.rel (0) target = $region17
    $region16: #{rvtdsan_forward.1} parent=1 // pred_region
      %753 = vsyncadd [#allocation4], 0
      %s755 = sshll.u32 [#allocation5], 4
      %s756 = int_to_ptr.vmem [resolvable:$true] %s755
      %s757 = sshll.u32 %s2, 4
      %s758 = int_to_ptr.hbm [resolvable:$true] %s757
      %760 = dma.vmem_to_hbm [thread:$0]  %s756, 32, %s758, [#allocation4]
    $region17: #{rvtdsan_forward.1} parent=1 // pred_fallthru
      _
    // Predicated region
    $region18: #{rvtdsan_forward.1} parent=1 // pred_check
      _
    $region19: #{rvtdsan_forward.1} parent=1 // pred_check_branch
      %762 = sbr.rel (0) target = $region21
    $region20: #{rvtdsan_forward.1} parent=1 // pred_region
      %764 = dma.done [#allocation4], 32
    $region21: #{rvtdsan_forward.1} parent=1 // pred_fallthru
      _
    %765 = vsyncpa [#allocation3], 1
    %766 = vsyncpa [#allocation4], 1

</llo_original>
